<compile_context>
chip_gen: v7x
topology: tpu7x:2x2x1
jax: 0.10.0
libtpu: 0.0.40
codegen_flags: <defaults>
</compile_context>

<pallas_src>
import jax
import jax.numpy as jnp
from jax.experimental import pallas as pl
from jax.experimental.pallas import tpu as pltpu

BN_EPS = 1e-05  # HPS['batchnorm_kwargs']['eps']


def mlp_kernel(x_ref, w1_ref, gamma_ref, beta_ref, w2_ref, b2_ref, o_ref):
    k = pl.program_id(0)

    @pl.when(k == 0)
    def _init():
        # Initialize the resident f32 output block with b2 -> the final "+ b2" is free.
        o_ref[...] = jnp.broadcast_to(b2_ref[...], o_ref.shape).astype(o_ref.dtype)

    # layer1 Linear for this hidden tile: bf16 operands, f32 MXU accumulation.
    # (b1 omitted: cancelled exactly by the batch-mean subtraction below — valid only
    #  for training-mode BN with batch statistics.)
    h = jnp.dot(x_ref[...], w1_ref[...], preferred_element_type=jnp.float32)  # (B, tk) f32

    # BatchNorm1d (training mode, batch stats, biased variance), single-pass stats
    # folded into one scale/shift FMA.
    inv_b = 1.0 / x_ref.shape[0]
    s = jnp.sum(h, axis=0, keepdims=True)                       # (1, tk)
    ss = jnp.sum(h * h, axis=0, keepdims=True)                  # (1, tk)
    mean = s * inv_b
    var = jnp.maximum(ss * inv_b - mean * mean, 0.0)            # guard tiny cancellation
    scale = gamma_ref[...] * jax.lax.rsqrt(var + BN_EPS)        # (1, tk)
    shift = beta_ref[...] - mean * scale                        # (1, tk)

    # Broadcast FMA + ReLU, all f32.
    h = jnp.maximum(h * scale + shift, 0.0)

    # layer2 Linear: accumulate over hidden tiles directly into the resident output.
    o_ref[...] += jnp.dot(h.astype(w2_ref.dtype), w2_ref[...],
                          preferred_element_type=jnp.float32)


def _vmem_capacity_bytes():
    cap = 128 << 20
    try:
        info_fn = getattr(pltpu, "get_tpu_info", None)
        if info_fn is not None:
            cap = int(getattr(info_fn(), "vmem_capacity_bytes", cap))
    except Exception:
        pass
    return cap


def _vmem_limit_bytes():
    """~75% of physical VMEM (v5e/v6e: 128 MiB, v7x: 64 MiB per TC)."""
    return int(_vmem_capacity_bytes() * 3 // 4)


def _default_block_k():
    """v7x's 64 MiB VMEM needs a smaller hidden tile; v5e/v6e keep 512."""
    return 256 if _vmem_capacity_bytes() <= (64 << 20) else 512


def _pick_tile(dim, target):
    """Largest tile <= target dividing dim, preferring 256-multiples (full-width
    MXU passes on v6e/v7x), then 128-multiples; falls back to the full dim."""
    if dim <= target:
        return dim
    for g in (256, 128):
        t = (target // g) * g
        while t >= g:
            if dim % t == 0:
                return t
            t -= g
    return dim


def _round_up(n, m):
    return ((n + m - 1) // m) * m


def _pad_axis(a, axis, new_size, value):
    pad = new_size - a.shape[axis]
    if pad <= 0:
        return a
    widths = [(0, 0)] * a.ndim
    widths[axis] = (0, pad)
    return jnp.pad(a, widths, constant_values=value)


def mlp_forward(x, w1, b1, gamma, beta, w2, b2, *, block_k=None):
    """Fused Linear -> BatchNorm1d(train) -> ReLU -> Linear.

    For best performance pass x/w1/w2 already in bf16 ("at rest"): the asarray calls
    below are then no-ops and no extra HBM convert round-trips are emitted.
    """
    B, in_dim = x.shape
    hidden = w1.shape[1]
    out_dim = w2.shape[1]

    # b1 is mathematically redundant under batch-stat BN (the batch mean contains it),
    # so skip its DMA and broadcast add entirely. (Must be restored for eval-mode BN.)
    del b1

    if block_k is None:
        block_k = _default_block_k()

    x_bf = jnp.asarray(x, jnp.bfloat16)
    w1_bf = jnp.asarray(w1, jnp.bfloat16)
    w2_bf = jnp.asarray(w2, jnp.bfloat16)
    gamma_2d = jnp.asarray(gamma, jnp.float32).reshape(1, hidden)
    beta_2d = jnp.asarray(beta, jnp.float32).reshape(1, hidden)
    b2_2d = jnp.asarray(b2, jnp.float32).reshape(1, out_dim)

    # Pad hidden to a 128 multiple so a lane-aligned tile always exists. Padding is
    # exact: zero W1 columns -> h=0 -> BN(0)*1+0 -> ReLU -> 0, and zero W2 rows
    # contribute nothing to the output.
    hp = _round_up(hidden, 128)
    if hp != hidden:
        w1_bf = _pad_axis(w1_bf, 1, hp, 0)
        w2_bf = _pad_axis(w2_bf, 0, hp, 0)
        gamma_2d = _pad_axis(gamma_2d, 1, hp, 1.0)
        beta_2d = _pad_axis(beta_2d, 1, hp, 0.0)
        hidden = hp

    tk = _pick_tile(hidden, block_k)   # hidden tile = reduction axis of matmul2
    grid = (hidden // tk,)

    return pl.pallas_call(
        mlp_kernel,
        out_shape=jax.ShapeDtypeStruct((B, out_dim), jnp.float32),
        grid_spec=pltpu.PrefetchScalarGridSpec(
            num_scalar_prefetch=0,
            grid=grid,
            in_specs=[
                # x: whole array resident in VMEM, single buffer, DMA'd once.
                pl.BlockSpec(memory_space=pltpu.MemorySpace.VMEM),
                pl.BlockSpec((in_dim, tk), lambda k: (0, k)),     # W1 column tile
                pl.BlockSpec((1, tk), lambda k: (0, k)),          # gamma tile
                pl.BlockSpec((1, tk), lambda k: (0, k)),          # beta tile
                pl.BlockSpec((tk, out_dim), lambda k: (k, 0)),    # W2 row tile
                pl.BlockSpec((1, out_dim), lambda k: (0, 0)),     # b2 (constant)
            ],
            # Output block index is constant across k -> resident accumulator,
            # written back to HBM once at the end.
            out_specs=pl.BlockSpec((B, out_dim), lambda k: (0, 0)),
        ),
        compiler_params=pltpu.CompilerParams(
            dimension_semantics=("arbitrary",),
            vmem_limit_bytes=_vmem_limit_bytes(),
        ),
    )(x_bf, w1_bf, gamma_2d, beta_2d, w2_bf, b2_2d)


def mlp_reference(x, w1, b1, gamma, beta, w2, b2):
    """Pure-JAX reference matching the kernel's numerics (bf16 matmul operands, f32 acc)."""
    h = jnp.dot(x.astype(jnp.bfloat16), w1.astype(jnp.bfloat16),
                preferred_element_type=jnp.float32) + b1
    mean = jnp.mean(h, axis=0, keepdims=True)
    var = jnp.mean((h - mean) ** 2, axis=0, keepdims=True)
    h = (h - mean) * jax.lax.rsqrt(var + BN_EPS) * gamma + beta
    h = jnp.maximum(h, 0.0)
    return jnp.dot(h.astype(jnp.bfloat16), w2.astype(jnp.bfloat16),
                   preferred_element_type=jnp.float32) + b2


if __name__ == "__main__":
    # Small, lane/sublane-aligned shapes consistent with the module
    # (in_dim -> hidden -> out_dim). block_k=128 exercises a multi-step hidden grid.
    B, in_dim, hidden, out_dim = 32, 128, 512, 256

    key = jax.random.PRNGKey(0)
    kx, kw1, kb1, kw2, kb2 = jax.random.split(key, 5)

    x = jax.random.normal(kx, (B, in_dim), dtype=jnp.float32)

    # PyTorch-style Linear init: U(-1/sqrt(fan_in), 1/sqrt(fan_in)).
    lim1 = 1.0 / jnp.sqrt(jnp.float32(in_dim))
    w1 = jax.random.uniform(kw1, (in_dim, hidden), jnp.float32, -lim1, lim1)
    b1 = jax.random.uniform(kb1, (hidden,), jnp.float32, -lim1, lim1)

    # BatchNorm1d affine params: gamma=1, beta=0 (default init).
    gamma = jnp.ones((hidden,), jnp.float32)
    beta = jnp.zeros((hidden,), jnp.float32)

    lim2 = 1.0 / jnp.sqrt(jnp.float32(hidden))
    w2 = jax.random.uniform(kw2, (hidden, out_dim), jnp.float32, -lim2, lim2)
    b2 = jax.random.uniform(kb2, (out_dim,), jnp.float32, -lim2, lim2)

    # bf16-at-rest activations/weights: wrapper asarray becomes a no-op (no extra
    # HBM convert round-trips before the kernel).
    x_bf = x.astype(jnp.bfloat16)
    w1_bf = w1.astype(jnp.bfloat16)
    w2_bf = w2.astype(jnp.bfloat16)

    y = mlp_forward(x_bf, w1_bf, b1, gamma, beta, w2_bf, b2, block_k=128)
    y = jax.block_until_ready(y)

    y_ref = mlp_reference(x_bf, w1_bf, b1, gamma, beta, w2_bf, b2)
    assert y.shape == (B, out_dim)
    max_err = float(jnp.max(jnp.abs(y - y_ref)))
    assert jnp.allclose(y, y_ref, atol=5e-2, rtol=5e-2), f"mismatch vs reference (max abs err {max_err})"

    print("KERNEL_OK")
</pallas_src>

<mosaic_0001>
module attributes {stable_mosaic.version = 11 : i64} {
  func.func @mlp_kernel(%arg0: i32, %arg1: memref<32x128xbf16, #tpu.memory_space<vmem>>, %arg2: memref<128x128xbf16, #tpu.memory_space<vmem>>, %arg3: memref<1x128xf32, #tpu.memory_space<vmem>>, %arg4: memref<1x128xf32, #tpu.memory_space<vmem>>, %arg5: memref<128x256xbf16, #tpu.memory_space<vmem>>, %arg6: memref<1x256xf32, #tpu.memory_space<vmem>>, %arg7: memref<32x256xf32, #tpu.memory_space<vmem>>) attributes {dimension_semantics = [#tpu.dimension_semantics<arbitrary>], iteration_bounds = array<i64: 4>, scalar_prefetch = 0 : i64, scratch_operands = 0 : i64, tpu.core_type = #tpu.core_type<tc>, window_params = [{pipeline_mode = #tpu.pipeline_mode<synchronous>, transform_indices = @transform_0, window_bounds = array<i64: 32, 128>}, {transform_indices = @transform_1, window_bounds = array<i64: 128, 128>}, {transform_indices = @transform_2, window_bounds = array<i64: 1, 128>}, {transform_indices = @transform_3, window_bounds = array<i64: 1, 128>}, {transform_indices = @transform_4, window_bounds = array<i64: 128, 256>}, {pipeline_mode = #tpu.pipeline_mode<synchronous>, transform_indices = @transform_5, window_bounds = array<i64: 1, 256>}, {pipeline_mode = #tpu.pipeline_mode<synchronous>, transform_indices = @transform_6, window_bounds = array<i64: 32, 256>}]} {
    %c0_i32 = arith.constant 0 : i32
    %0 = arith.cmpi eq, %arg0, %c0_i32 : i32
    %1 = arith.extui %0 : i1 to i32
    %c0_i32_0 = arith.constant 0 : i32
    %2 = arith.cmpi ne, %1, %c0_i32_0 : i32
    scf.if %2 {
      %c0_22 = arith.constant 0 : index
      %c0_23 = arith.constant 0 : index
      %39 = vector.load %arg6[%c0_22, %c0_23] : memref<1x256xf32, #tpu.memory_space<vmem>>, vector<1x256xf32>
      %40 = vector.shape_cast %39 : vector<1x256xf32> to vector<1x256xf32>
      %41 = vector.broadcast %40 : vector<1x256xf32> to vector<32x256xf32>
      %c0_24 = arith.constant 0 : index
      %c0_25 = arith.constant 0 : index
      %42 = vector.load %arg7[%c0_24, %c0_25] : memref<32x256xf32, #tpu.memory_space<vmem>>, vector<32x256xf32>
      tpu.vector_store %arg7[%c0_24, %c0_25], %41 {strides = array<i32>} : memref<32x256xf32, #tpu.memory_space<vmem>>, vector<32x256xf32>,
    } else {
    }
    %c0 = arith.constant 0 : index
    %c0_1 = arith.constant 0 : index
    %3 = vector.load %arg1[%c0, %c0_1] : memref<32x128xbf16, #tpu.memory_space<vmem>>, vector<32x128xbf16>
    %c0_2 = arith.constant 0 : index
    %c0_3 = arith.constant 0 : index
    %4 = vector.load %arg2[%c0_2, %c0_3] : memref<128x128xbf16, #tpu.memory_space<vmem>>, vector<128x128xbf16>
    %cst = arith.constant dense<0.000000e+00> : vector<32x128xf32>
    %5 = tpu.matmul %3, %4, %cst {dimension_numbers = #tpu.dot_dimension_numbers<[1], [0], [0], [1], [0, 0, 1, 1], [], []>} : vector<32x128xbf16>, vector<128x128xbf16>, vector<32x128xf32> -> vector<32x128xf32>
    %cst_4 = arith.constant dense<0.000000e+00> : vector<128xf32>
    %6 = vector.multi_reduction <add>, %5, %cst_4 [0] : vector<32x128xf32> to vector<128xf32>
    %7 = vector.shape_cast %6 : vector<128xf32> to vector<1x128xf32>
    %8 = arith.mulf %5, %5 : vector<32x128xf32>
    %cst_5 = arith.constant dense<0.000000e+00> : vector<128xf32>
    %9 = vector.multi_reduction <add>, %8, %cst_5 [0] : vector<32x128xf32> to vector<128xf32>
    %10 = vector.shape_cast %9 : vector<128xf32> to vector<1x128xf32>
    %cst_6 = arith.constant 3.125000e-02 : f32
    %11 = vector.broadcast %cst_6 : f32 to vector<1x128xf32>
    %12 = arith.mulf %7, %11 : vector<1x128xf32>
    %cst_7 = arith.constant 3.125000e-02 : f32
    %13 = vector.broadcast %cst_7 : f32 to vector<1x128xf32>
    %14 = arith.mulf %10, %13 : vector<1x128xf32>
    %15 = arith.mulf %12, %12 : vector<1x128xf32>
    %16 = arith.subf %14, %15 : vector<1x128xf32>
    %cst_8 = arith.constant 0.000000e+00 : f32
    %17 = vector.broadcast %cst_8 : f32 to vector<1x128xf32>
    %18 = arith.maximumf %16, %17 : vector<1x128xf32>
    %c0_9 = arith.constant 0 : index
    %c0_10 = arith.constant 0 : index
    %19 = vector.load %arg3[%c0_9, %c0_10] : memref<1x128xf32, #tpu.memory_space<vmem>>, vector<1x128xf32>
    %cst_11 = arith.constant 9.99999974E-6 : f32
    %20 = vector.broadcast %cst_11 : f32 to vector<1x128xf32>
    %21 = arith.addf %18, %20 : vector<1x128xf32>
    %22 = math.rsqrt %21 : vector<1x128xf32>
    %23 = arith.mulf %19, %22 : vector<1x128xf32>
    %c0_12 = arith.constant 0 : index
    %c0_13 = arith.constant 0 : index
    %24 = vector.load %arg4[%c0_12, %c0_13] : memref<1x128xf32, #tpu.memory_space<vmem>>, vector<1x128xf32>
    %25 = arith.mulf %12, %23 : vector<1x128xf32>
    %26 = arith.subf %24, %25 : vector<1x128xf32>
    %27 = vector.broadcast %23 : vector<1x128xf32> to vector<32x128xf32>
    %28 = arith.mulf %5, %27 : vector<32x128xf32>
    %29 = vector.broadcast %26 : vector<1x128xf32> to vector<32x128xf32>
    %30 = arith.addf %28, %29 : vector<32x128xf32>
    %cst_14 = arith.constant 0.000000e+00 : f32
    %31 = vector.broadcast %cst_14 : f32 to vector<32x128xf32>
    %32 = arith.maximumf %30, %31 : vector<32x128xf32>
    %c0_15 = arith.constant 0 : index
    %c0_16 = arith.constant 0 : index
    %33 = vector.load %arg7[%c0_15, %c0_16] : memref<32x256xf32, #tpu.memory_space<vmem>>, vector<32x256xf32>
    %34 = arith.truncf %32 : vector<32x128xf32> to vector<32x128xbf16>
    %c0_17 = arith.constant 0 : index
    %c0_18 = arith.constant 0 : index
    %35 = vector.load %arg5[%c0_17, %c0_18] : memref<128x256xbf16, #tpu.memory_space<vmem>>, vector<128x256xbf16>
    %cst_19 = arith.constant dense<0.000000e+00> : vector<32x256xf32>
    %36 = tpu.matmul %34, %35, %cst_19 {dimension_numbers = #tpu.dot_dimension_numbers<[1], [0], [0], [1], [0, 0, 1, 1], [], []>} : vector<32x128xbf16>, vector<128x256xbf16>, vector<32x256xf32> -> vector<32x256xf32>
    %37 = arith.addf %33, %36 : vector<32x256xf32>
    %c0_20 = arith.constant 0 : index
    %c0_21 = arith.constant 0 : index
    %38 = vector.load %arg7[%c0_20, %c0_21] : memref<32x256xf32, #tpu.memory_space<vmem>>, vector<32x256xf32>
    tpu.vector_store %arg7[%c0_20, %c0_21], %37 {strides = array<i32>} : memref<32x256xf32, #tpu.memory_space<vmem>>, vector<32x256xf32>,
    return
  }
  func.func @transform_0(%arg0: i32) -> (i32, i32) {
    %c0_i32 = arith.constant 0 : i32
    %c0_i32_0 = arith.constant 0 : i32
    %c0_i32_1 = arith.constant 0 : i32
    return %c0_i32, %c0_i32_0 : i32, i32
  }
  func.func @transform_1(%arg0: i32) -> (i32, i32) {
    %c0_i32 = arith.constant 0 : i32
    %c0_i32_0 = arith.constant 0 : i32
    return %c0_i32, %arg0 : i32, i32
  }
  func.func @transform_2(%arg0: i32) -> (i32, i32) {
    %c0_i32 = arith.constant 0 : i32
    %c0_i32_0 = arith.constant 0 : i32
    return %c0_i32, %arg0 : i32, i32
  }
  func.func @transform_3(%arg0: i32) -> (i32, i32) {
    %c0_i32 = arith.constant 0 : i32
    %c0_i32_0 = arith.constant 0 : i32
    return %c0_i32, %arg0 : i32, i32
  }
  func.func @transform_4(%arg0: i32) -> (i32, i32) {
    %c0_i32 = arith.constant 0 : i32
    %c0_i32_0 = arith.constant 0 : i32
    return %arg0, %c0_i32 : i32, i32
  }
  func.func @transform_5(%arg0: i32) -> (i32, i32) {
    %c0_i32 = arith.constant 0 : i32
    %c0_i32_0 = arith.constant 0 : i32
    %c0_i32_1 = arith.constant 0 : i32
    return %c0_i32, %c0_i32_0 : i32, i32
  }
  func.func @transform_6(%arg0: i32) -> (i32, i32) {
    %c0_i32 = arith.constant 0 : i32
    %c0_i32_0 = arith.constant 0 : i32
    %c0_i32_1 = arith.constant 0 : i32
    return %c0_i32, %c0_i32_0 : i32, i32
  }
}

</mosaic_0001>

<llo_original>
// kernel: tpu_custom_call.1
$region0: #{tpu_custom_call.1}
  #allocation0 [shape = 'u32[]', space=smem, size = 0x4, offset = 0x4, fixed_abs, tag = 'smem constant byte address 0x4 - core index']
  #allocation1 [shape = 'u32[144,128]{1,0:T(1,128)}', space=vmem, size = 0x12000, scoped, tag = 'internal scratch']
  %s0 = inlined_call_operand.hbm [shape: bf16[32,128], index: 0, kind: input, shape index: {}]
  %s1 = inlined_call_operand.hbm [shape: bf16[128,512], index: 1, kind: input, shape index: {}]
  %s2 = inlined_call_operand.hbm [shape: f32[1,512], index: 2, kind: input, shape index: {}]
  %s3 = inlined_call_operand.hbm [shape: f32[1,512], index: 3, kind: input, shape index: {}]
  %s4 = inlined_call_operand.hbm [shape: bf16[512,256], index: 4, kind: input, shape index: {}]
  %s5 = inlined_call_operand.hbm [shape: f32[1,256], index: 5, kind: input, shape index: {}]
  %s6 = inlined_call_operand.hbm [shape: f32[32,256], index: 6, kind: output, shape index: {}]
  %s7 = sld [smem:[#allocation0]]
  $region85: #{tpu_custom_call.1} parent=0
    _
  %s9 = ssub.s32 1, %s7
  %s10 = scalar_select 0, %s9, %s7
  $region1: #{tpu_custom_call.1} parent=0
    #allocation2 [shape = 'u8[8192]{0}', space=vmem, size = 0x2000, scoped, tag = 'input window, operand 0, single buffered']
    #allocation3 [shape = 's32[2]{0}', space=sflag, size = 0x8, scoped, tag = 'scoped memory for tpu_custom_call.1']
    #allocation4 [shape = 's32[2]{0}', space=sflag, size = 0x8, scoped, tag = 'scoped memory for tpu_custom_call.1']
    #allocation5 [shape = 'u8[65536]{0}', space=vmem, size = 0x10000, scoped, tag = 'input window, operand 1']
    #allocation6 [shape = 's32[2]{0}', space=sflag, size = 0x8, scoped, tag = 'scoped memory for tpu_custom_call.1']
    #allocation7 [shape = 'u8[1024]{0}', space=vmem, size = 0x400, scoped, tag = 'input window, operand 2']
    #allocation8 [shape = 'u8[1024]{0}', space=vmem, size = 0x400, scoped, tag = 'input window, operand 3']
    #allocation9 [shape = 's32[2]{0}', space=sflag, size = 0x8, scoped, tag = 'scoped memory for tpu_custom_call.1']
    #allocation10 [shape = 'u8[131072]{0}', space=vmem, size = 0x20000, scoped, tag = 'input window, operand 4']
    #allocation11 [shape = 'u8[1024]{0}', space=vmem, size = 0x400, scoped, tag = 'input window, operand 5, single buffered']
    #allocation12 [shape = 's32[1]{0}', space=sflag, size = 0x4, scoped, tag = 'scoped memory for tpu_custom_call.1']
    #allocation13 [shape = 'u8[32768]{0}', space=vmem, size = 0x8000, scoped, tag = 'output window, operand 0, single buffered']
    %11 = vsyncpa [#allocation3], 0
    %12 = vsyncpa [#allocation6], 0
    %s13 = scalar_lea.sflag [#allocation6], 1
    %14 = vsyncpa %s13, 0
    %15 = vsyncpa [#allocation9], 0
    %s16 = scalar_lea.sflag [#allocation9], 1
    %17 = vsyncpa %s16, 0
    %18 = vsyncpa [#allocation12], 0
    %19 = vsyncpa [#allocation4], 0
    loop: start=0, step=1, limit=6
    $region2: #{tpu_custom_call.1} parent=1 // loop_pre_header
      _
    $region3: #{tpu_custom_call.1} parent=1 // loop_header
      %s21 = sphi 0, %s25
      %p22 = scmp.ge.s32.totalorder %s21, 6
      %s29 = sphi 0, %s29
      %s31 = sphi 0, %s29
      %s32 = sphi 0, %s31
      %s46 = sphi 0, %s32
      %s52 = sphi 0, %s54
      %s55 = sphi 0, %s52
      %s56 = sphi 0, %s55
      %s72 = sphi 0, %s56
      %s78 = sphi 0, %s80
      %s81 = sphi 0, %s78
      %s82 = sphi 0, %s81
      %s98 = sphi 0, %s82
      %s104 = sphi 0, %s106
      %s107 = sphi 0, %s104
      %s108 = sphi 0, %s107
      %s124 = sphi 0, %s108
      %s130 = sphi 0, %s132
      %s133 = sphi 0, %s130
      %s134 = sphi 0, %s133
      %s150 = sphi 0, %s134
      %s154 = sphi 0, %s154
      %s156 = sphi 0, %s154
      %s157 = sphi 0, %s156
      %s171 = sphi 0, %s157
      %s175 = sphi 0, %s175
      %s177 = sphi 0, %s175
      %s178 = sphi 0, %s177
      %s192 = sphi 0, %s178
    $region4: #{tpu_custom_call.1} parent=1 // loop_header_branch
      %24 = sbr.rel (%p22) target = $region8
    $region5: #{tpu_custom_call.1} parent=1 // loop_body
      %s26 = ssub.s32 %s21, 1
      %s27 = ssub.s32 %s21, 2
      %s28 = sadd.s32 %s21, 1
      %s30 = sadd.s32 %s29, 1
      %p33 = scmp.eq.s32.totalorder %s21, 3
      %p34 = scmp.ne.s32.totalorder %s29, %s31
      %p35 = scmp.eq.s32.totalorder %s21, 0
      %p36 = por %p34, %p35
      %p37 = scmp.ne.s32.totalorder %s29, %s31
      %p38 = scmp.eq.s32.totalorder %s26, 3
      %p39 = por %p37, %p38
      %p40 = scmp.ne.s32.totalorder %s31, %s32
      %p41 = scmp.eq.s32.totalorder %s26, 0
      %p42 = por %p40, %p41
      %p43 = scmp.ne.s32.totalorder %s31, %s32
      %p44 = scmp.eq.s32.totalorder %s27, 3
      %p45 = por %p43, %p44
      %p47 = scmp.ne.s32.totalorder %s32, %s46
      %p48 = scmp.eq.s32.totalorder %s27, 0
      %p49 = por %p47, %p48
      %s50 = ssub.s32 %s21, %s28
      %p51 = scmp.eq.s32.totalorder %s50, 0
      %s53 = sadd.s32 %s52, 1
      %s54 = scalar_select %p51, %s52, %s53
      %p57 = pneg %p51
      %p58 = scmp.eq.s32.totalorder %s21, 3
      %p59 = por %p57, %p58
      %p60 = scmp.ne.s32.totalorder %s52, %s55
      %p61 = scmp.eq.s32.totalorder %s21, 0
      %p62 = por %p60, %p61
      %p63 = scmp.ne.s32.totalorder %s52, %s55
      %p64 = scmp.eq.s32.totalorder %s26, 3
      %p65 = por %p63, %p64
      %p66 = scmp.ne.s32.totalorder %s55, %s56
      %p67 = scmp.eq.s32.totalorder %s26, 0
      %p68 = por %p66, %p67
      %p69 = scmp.ne.s32.totalorder %s55, %s56
      %p70 = scmp.eq.s32.totalorder %s27, 3
      %p71 = por %p69, %p70
      %p73 = scmp.ne.s32.totalorder %s56, %s72
      %p74 = scmp.eq.s32.totalorder %s27, 0
      %p75 = por %p73, %p74
      %s76 = ssub.s32 %s21, %s28
      %p77 = scmp.eq.s32.totalorder %s76, 0
      %s79 = sadd.s32 %s78, 1
      %s80 = scalar_select %p77, %s78, %s79
      %p83 = pneg %p77
      %p84 = scmp.eq.s32.totalorder %s21, 3
      %p85 = por %p83, %p84
      %p86 = scmp.ne.s32.totalorder %s78, %s81
      %p87 = scmp.eq.s32.totalorder %s21, 0
      %p88 = por %p86, %p87
      %p89 = scmp.ne.s32.totalorder %s78, %s81
      %p90 = scmp.eq.s32.totalorder %s26, 3
      %p91 = por %p89, %p90
      %p92 = scmp.ne.s32.totalorder %s81, %s82
      %p93 = scmp.eq.s32.totalorder %s26, 0
      %p94 = por %p92, %p93
      %p95 = scmp.ne.s32.totalorder %s81, %s82
      %p96 = scmp.eq.s32.totalorder %s27, 3
      %p97 = por %p95, %p96
      %p99 = scmp.ne.s32.totalorder %s82, %s98
      %p100 = scmp.eq.s32.totalorder %s27, 0
      %p101 = por %p99, %p100
      %s102 = ssub.s32 %s21, %s28
      %p103 = scmp.eq.s32.totalorder %s102, 0
      %s105 = sadd.s32 %s104, 1
      %s106 = scalar_select %p103, %s104, %s105
      %p109 = pneg %p103
      %p110 = scmp.eq.s32.totalorder %s21, 3
      %p111 = por %p109, %p110
      %p112 = scmp.ne.s32.totalorder %s104, %s107
      %p113 = scmp.eq.s32.totalorder %s21, 0
      %p114 = por %p112, %p113
      %p115 = scmp.ne.s32.totalorder %s104, %s107
      %p116 = scmp.eq.s32.totalorder %s26, 3
      %p117 = por %p115, %p116
      %p118 = scmp.ne.s32.totalorder %s107, %s108
      %p119 = scmp.eq.s32.totalorder %s26, 0
      %p120 = por %p118, %p119
      %p121 = scmp.ne.s32.totalorder %s107, %s108
      %p122 = scmp.eq.s32.totalorder %s27, 3
      %p123 = por %p121, %p122
      %p125 = scmp.ne.s32.totalorder %s108, %s124
      %p126 = scmp.eq.s32.totalorder %s27, 0
      %p127 = por %p125, %p126
      %s128 = ssub.s32 %s21, %s28
      %p129 = scmp.eq.s32.totalorder %s128, 0
      %s131 = sadd.s32 %s130, 1
      %s132 = scalar_select %p129, %s130, %s131
      %p135 = pneg %p129
      %p136 = scmp.eq.s32.totalorder %s21, 3
      %p137 = por %p135, %p136
      %p138 = scmp.ne.s32.totalorder %s130, %s133
      %p139 = scmp.eq.s32.totalorder %s21, 0
      %p140 = por %p138, %p139
      %p141 = scmp.ne.s32.totalorder %s130, %s133
      %p142 = scmp.eq.s32.totalorder %s26, 3
      %p143 = por %p141, %p142
      %p144 = scmp.ne.s32.totalorder %s133, %s134
      %p145 = scmp.eq.s32.totalorder %s26, 0
      %p146 = por %p144, %p145
      %p147 = scmp.ne.s32.totalorder %s133, %s134
      %p148 = scmp.eq.s32.totalorder %s27, 3
      %p149 = por %p147, %p148
      %p151 = scmp.ne.s32.totalorder %s134, %s150
      %p152 = scmp.eq.s32.totalorder %s27, 0
      %p153 = por %p151, %p152
      %s155 = sadd.s32 %s154, 1
      %p158 = scmp.eq.s32.totalorder %s21, 3
      %p159 = scmp.ne.s32.totalorder %s154, %s156
      %p160 = scmp.eq.s32.totalorder %s21, 0
      %p161 = por %p159, %p160
      %p162 = scmp.ne.s32.totalorder %s154, %s156
      %p163 = scmp.eq.s32.totalorder %s26, 3
      %p164 = por %p162, %p163
      %p165 = scmp.ne.s32.totalorder %s156, %s157
      %p166 = scmp.eq.s32.totalorder %s26, 0
      %p167 = por %p165, %p166
      %p168 = scmp.ne.s32.totalorder %s156, %s157
      %p169 = scmp.eq.s32.totalorder %s27, 3
      %p170 = por %p168, %p169
      %p172 = scmp.ne.s32.totalorder %s157, %s171
      %p173 = scmp.eq.s32.totalorder %s27, 0
      %p174 = por %p172, %p173
      %s176 = sadd.s32 %s175, 1
      %p179 = scmp.eq.s32.totalorder %s21, 3
      %p180 = scmp.ne.s32.totalorder %s175, %s177
      %p181 = scmp.eq.s32.totalorder %s21, 0
      %p182 = por %p180, %p181
      %p183 = scmp.ne.s32.totalorder %s175, %s177
      %p184 = scmp.eq.s32.totalorder %s26, 3
      %p185 = por %p183, %p184
      %p186 = scmp.ne.s32.totalorder %s177, %s178
      %p187 = scmp.eq.s32.totalorder %s26, 0
      %p188 = por %p186, %p187
      %p189 = scmp.ne.s32.totalorder %s177, %s178
      %p190 = scmp.eq.s32.totalorder %s27, 3
      %p191 = por %p189, %p190
      %p193 = scmp.ne.s32.totalorder %s178, %s192
      %p194 = scmp.eq.s32.totalorder %s27, 0
      %p195 = por %p193, %p194
      %p196 = scmp.le.s32.totalorder 1, %s21
      %p197 = scmp.lt.s32.totalorder %s21, 5
      %p198 = pnand %p196, %p197
      %p199 = pneg %p198
      // Predicated region
      $region9: #{tpu_custom_call.1} parent=5 // pred_check
        _
      $region10: #{tpu_custom_call.1} parent=5 // pred_check_branch
        %201 = sbr.rel (%p198) target = $region12
      $region11: #{tpu_custom_call.1} parent=5 // pred_region
        %s202 = ssub.s32 %s21, 1
        // Predicated region
        $region13: #{tpu_custom_call.1} parent=11 // pred_check
          %p203 = pneg %p42
        $region14: #{tpu_custom_call.1} parent=11 // pred_check_branch
          %205 = sbr.rel (%p203) target = $region16
        $region15: #{tpu_custom_call.1} parent=11 // pred_region
          %s207 = ssub.s32 256, 256
          %208 = vsyncadd [#allocation3], %s207
          %s209 = sshll.u32 [#allocation2], 4
          %s210 = int_to_ptr.vmem [resolvable:$true] %s209
          %215 = dma.hbm_to_vmem [thread:$0]  %s0, 256, %s210, [#allocation3], 64, 64, 4
        $region16: #{tpu_custom_call.1} parent=11 // pred_fallthru
          _
        // Predicated region
        $region17: #{tpu_custom_call.1} parent=11 // pred_check
          %p216 = pneg %p167
        $region18: #{tpu_custom_call.1} parent=11 // pred_check_branch
          %218 = sbr.rel (%p216) target = $region20
        $region19: #{tpu_custom_call.1} parent=11 // pred_region
          %s220 = ssub.s32 32, 32
          %221 = vsyncadd [#allocation12], %s220
          %s223 = sshll.u32 [#allocation11], 4
          %s224 = int_to_ptr.vmem [resolvable:$true] %s223
          %226 = dma.hbm_to_vmem [thread:$0]  %s5, 32, %s224, [#allocation12]
        $region20: #{tpu_custom_call.1} parent=11 // pred_fallthru
          _
      $region12: #{tpu_custom_call.1} parent=5 // pred_fallthru
        _
      %p227 = scmp.lt.s32.totalorder %s21, 4
      // Predicated region
      $region21: #{tpu_custom_call.1} parent=5 // pred_check
        %p228 = pneg %p227
      $region22: #{tpu_custom_call.1} parent=5 // pred_check_branch
        %230 = sbr.rel (%p228) target = $region24
      $region23: #{tpu_custom_call.1} parent=5 // pred_region
        // Predicated region
        $region25: #{tpu_custom_call.1} parent=23 // pred_check
          %p231 = pneg %p62
        $region26: #{tpu_custom_call.1} parent=23 // pred_check_branch
          %233 = sbr.rel (%p231) target = $region28
        $region27: #{tpu_custom_call.1} parent=23 // pred_region
          %s234 = sand.u32 %s21, 1
          %s235 = scalar_lea.sflag [#allocation6], %s234
          %s236 = sand.u32 %s52, 1
          %s237 = smul.addr %s236, 64
          %s238 = scalar_lea.vmem [#allocation5], %s237
          %s240 = ssub.s32 1024, 1024
          %241 = vsyncadd %s235, %s240
          %s242 = smul.addr %s21, 64
          %s243 = scalar_lea.hbm %s1, %s242
          %s244 = sshll.u32 %s238, 4
          %s245 = int_to_ptr.vmem [resolvable:$true] %s244
          %250 = dma.hbm_to_vmem [thread:$0]  %s243, 1024, %s245, %s235, 256, 64, 4
        $region28: #{tpu_custom_call.1} parent=23 // pred_fallthru
          _
        // Predicated region
        $region29: #{tpu_custom_call.1} parent=23 // pred_check
          %p251 = pneg %p88
        $region30: #{tpu_custom_call.1} parent=23 // pred_check_branch
          %253 = sbr.rel (%p251) target = $region32
        $region31: #{tpu_custom_call.1} parent=23 // pred_region
          %s254 = sand.u32 %s21, 1
          %s255 = scalar_lea.sflag [#allocation6], %s254
          %s256 = sand.u32 %s78, 1
          %s257 = scalar_lea.vmem [#allocation7], %s256
          %s259 = ssub.s32 16, 16
          %260 = vsyncadd %s255, %s259
          %s261 = smul.addr %s21, 16
          %s262 = scalar_lea.hbm %s2, %s261
          %s264 = sshll.u32 %s257, 4
          %s265 = int_to_ptr.vmem [resolvable:$true] %s264
          %267 = dma.hbm_to_vmem [thread:$0]  %s262, 16, %s265, %s255
        $region32: #{tpu_custom_call.1} parent=23 // pred_fallthru
          _
        // Predicated region
        $region33: #{tpu_custom_call.1} parent=23 // pred_check
          %p268 = pneg %p114
        $region34: #{tpu_custom_call.1} parent=23 // pred_check_branch
          %270 = sbr.rel (%p268) target = $region36
        $region35: #{tpu_custom_call.1} parent=23 // pred_region
          %s271 = sand.u32 %s21, 1
          %s272 = scalar_lea.sflag [#allocation9], %s271
          %s273 = sand.u32 %s104, 1
          %s274 = scalar_lea.vmem [#allocation8], %s273
          %s276 = ssub.s32 16, 16
          %277 = vsyncadd %s272, %s276
          %s278 = smul.addr %s21, 16
          %s279 = scalar_lea.hbm %s3, %s278
          %s281 = sshll.u32 %s274, 4
          %s282 = int_to_ptr.vmem [resolvable:$true] %s281
          %284 = dma.hbm_to_vmem [thread:$0]  %s279, 16, %s282, %s272
        $region36: #{tpu_custom_call.1} parent=23 // pred_fallthru
          _
        // Predicated region
        $region37: #{tpu_custom_call.1} parent=23 // pred_check
          %p285 = pneg %p140
        $region38: #{tpu_custom_call.1} parent=23 // pred_check_branch
          %287 = sbr.rel (%p285) target = $region40
        $region39: #{tpu_custom_call.1} parent=23 // pred_region
          %s288 = sand.u32 %s21, 1
          %s289 = scalar_lea.sflag [#allocation9], %s288
          %s290 = sand.u32 %s130, 1
          %s291 = smul.addr %s290, 128
          %s292 = scalar_lea.vmem [#allocation10], %s291
          %s293 = smul.u32 16, %s21
          %s295 = ssub.s32 2048, 2048
          %296 = vsyncadd %s289, %s295
          %s297 = smul.addr %s293, 2
          %s298 = smul.addr %s297, 64
          %s299 = scalar_lea.hbm %s4, %s298
          %s300 = sshll.u32 %s292, 4
          %s301 = int_to_ptr.vmem [resolvable:$true] %s300
          %306 = dma.hbm_to_vmem [thread:$0]  %s299, 2048, %s301, %s289, 128, 128, 8
        $region40: #{tpu_custom_call.1} parent=23 // pred_fallthru
          _
      $region24: #{tpu_custom_call.1} parent=5 // pred_fallthru
        _
      %p307 = scmp.le.s32.totalorder 1, %s21
      %p308 = scmp.lt.s32.totalorder %s21, 5
      %p309 = pnand %p307, %p308
      %p310 = pneg %p309
      // Predicated region
      $region41: #{tpu_custom_call.1} parent=5 // pred_check
        _
      $region42: #{tpu_custom_call.1} parent=5 // pred_check_branch
        %312 = sbr.rel (%p309) target = $region44
      $region43: #{tpu_custom_call.1} parent=5 // pred_region
        %s313 = ssub.s32 %s21, 1
        // Predicated region
        $region45: #{tpu_custom_call.1} parent=43 // pred_check
          %p314 = pneg %p42
        $region46: #{tpu_custom_call.1} parent=43 // pred_check_branch
          %316 = sbr.rel (%p314) target = $region48
        $region47: #{tpu_custom_call.1} parent=43 // pred_region
          %317 = dma.done [#allocation3], 256
        $region48: #{tpu_custom_call.1} parent=43 // pred_fallthru
          _
        %s318 = sand.u32 %s26, 1
        %s319 = scalar_lea.sflag [#allocation6], %s318
        %s320 = sand.u32 %s55, 1
        %s321 = smul.addr %s320, 64
        %s322 = scalar_lea.vmem [#allocation5], %s321
        // Predicated region
        $region49: #{tpu_custom_call.1} parent=43 // pred_check
          %p323 = pneg %p68
        $region50: #{tpu_custom_call.1} parent=43 // pred_check_branch
          %325 = sbr.rel (%p323) target = $region52
        $region51: #{tpu_custom_call.1} parent=43 // pred_region
          %326 = dma.done %s319, 1024
        $region52: #{tpu_custom_call.1} parent=43 // pred_fallthru
          _
        %s327 = sand.u32 %s26, 1
        %s328 = scalar_lea.sflag [#allocation6], %s327
        %s329 = sand.u32 %s81, 1
        %s330 = scalar_lea.vmem [#allocation7], %s329
        // Predicated region
        $region53: #{tpu_custom_call.1} parent=43 // pred_check
          %p331 = pneg %p94
        $region54: #{tpu_custom_call.1} parent=43 // pred_check_branch
          %333 = sbr.rel (%p331) target = $region56
        $region55: #{tpu_custom_call.1} parent=43 // pred_region
          %334 = dma.done %s328, 16
        $region56: #{tpu_custom_call.1} parent=43 // pred_fallthru
          _
        %s335 = sand.u32 %s26, 1
        %s336 = scalar_lea.sflag [#allocation9], %s335
        %s337 = sand.u32 %s107, 1
        %s338 = scalar_lea.vmem [#allocation8], %s337
        // Predicated region
        $region57: #{tpu_custom_call.1} parent=43 // pred_check
          %p339 = pneg %p120
        $region58: #{tpu_custom_call.1} parent=43 // pred_check_branch
          %341 = sbr.rel (%p339) target = $region60
        $region59: #{tpu_custom_call.1} parent=43 // pred_region
          %342 = dma.done %s336, 16
        $region60: #{tpu_custom_call.1} parent=43 // pred_fallthru
          _
        %s343 = sand.u32 %s26, 1
        %s344 = scalar_lea.sflag [#allocation9], %s343
        %s345 = sand.u32 %s133, 1
        %s346 = smul.addr %s345, 128
        %s347 = scalar_lea.vmem [#allocation10], %s346
        // Predicated region
        $region61: #{tpu_custom_call.1} parent=43 // pred_check
          %p348 = pneg %p146
        $region62: #{tpu_custom_call.1} parent=43 // pred_check_branch
          %350 = sbr.rel (%p348) target = $region64
        $region63: #{tpu_custom_call.1} parent=43 // pred_region
          %351 = dma.done %s344, 2048
        $region64: #{tpu_custom_call.1} parent=43 // pred_fallthru
          _
        // Predicated region
        $region65: #{tpu_custom_call.1} parent=43 // pred_check
          %p352 = pneg %p167
        $region66: #{tpu_custom_call.1} parent=43 // pred_check_branch
          %354 = sbr.rel (%p352) target = $region68
        $region67: #{tpu_custom_call.1} parent=43 // pred_region
          %355 = dma.done [#allocation12], 32
        $region68: #{tpu_custom_call.1} parent=43 // pred_fallthru
          _
        %p356 = pneg %p42
        %p357 = pneg %p39
        %s358 = sand.u32 %s26, 1
        %s359 = scalar_lea.sflag [#allocation6], %s358
        %s360 = sand.u32 %s55, 1
        %s361 = smul.addr %s360, 64
        %s362 = scalar_lea.vmem [#allocation5], %s361
        %p363 = pneg %p68
        %p364 = pneg %p65
        %s365 = sand.u32 %s26, 1
        %s366 = scalar_lea.sflag [#allocation6], %s365
        %s367 = sand.u32 %s81, 1
        %s368 = scalar_lea.vmem [#allocation7], %s367
        %p369 = pneg %p94
        %p370 = pneg %p91
        %s371 = sand.u32 %s26, 1
        %s372 = scalar_lea.sflag [#allocation9], %s371
        %s373 = sand.u32 %s107, 1
        %s374 = scalar_lea.vmem [#allocation8], %s373
        %p375 = pneg %p120
        %p376 = pneg %p117
        %s377 = sand.u32 %s26, 1
        %s378 = scalar_lea.sflag [#allocation9], %s377
        %s379 = sand.u32 %s133, 1
        %s380 = smul.addr %s379, 128
        %s381 = scalar_lea.vmem [#allocation10], %s380
        %p382 = pneg %p146
        %p383 = pneg %p143
        %p384 = pneg %p167
        %p385 = pneg %p164
        %p386 = pneg %p188
        %p387 = pneg %p185
        %s388 = smul.u32 16, %s26
        %p390 = scmp.eq.s32.totalorder %s26, 0
        // Predicated region
        $region69: #{tpu_custom_call.1} parent=43 // pred_check
          %p391 = pneg %p390
        $region70: #{tpu_custom_call.1} parent=43 // pred_check_branch
          %393 = sbr.rel (%p391) target = $region72
        $region71: #{tpu_custom_call.1} parent=43 // pred_region
          %v394 = vld [vmem:[#allocation11] sm:$0x3]
          %v396 = vlaneseq
          %v397 = vshrl.u32 %v396, 7
          %v398 = vsub.s32 0, %v397
          %v399 = vrot.slane %v394, %v398
          %v400 = vlaneseq
          %v401 = vshrl.u32 %v400, 7
          %v402 = vsub.s32 1, %v401
          %v403 = vrot.slane %v394, %v402
          %406 = vst [vmem:[#allocation13] sm:$0xff] %v399
          %407 = vst [vmem:[#allocation13 + $0x8] sm:$0xff] %v403
          %408 = vst [vmem:[#allocation13 + $0x10] sm:$0xff] %v399
          %409 = vst [vmem:[#allocation13 + $0x18] sm:$0xff] %v403
          %410 = vst [vmem:[#allocation13 + $0x20] sm:$0xff] %v399
          %411 = vst [vmem:[#allocation13 + $0x28] sm:$0xff] %v403
          %412 = vst [vmem:[#allocation13 + $0x30] sm:$0xff] %v399
          %413 = vst [vmem:[#allocation13 + $0x38] sm:$0xff] %v403
        $region72: #{tpu_custom_call.1} parent=43 // pred_fallthru
          _
        %v414 = vld [vmem:[#allocation2] sm:$0xf]
        %v415 = vld [vmem:[#allocation2 + $0x4] sm:$0xf]
        %v416 = vld [vmem:[#allocation2 + $0x8] sm:$0xf]
        %v417 = vld [vmem:[#allocation2 + $0xc] sm:$0xf]
        %v418 = vld [vmem:[%s322] sm:$0xf]
        %v419 = vld [vmem:[%s322 + $0x4] sm:$0xf]
        %v420 = vld [vmem:[%s322 + $0x8] sm:$0xf]
        %v421 = vld [vmem:[%s322 + $0xc] sm:$0xf]
        %v422 = vld [vmem:[%s322 + $0x10] sm:$0xf]
        %v423 = vld [vmem:[%s322 + $0x14] sm:$0xf]
        %v424 = vld [vmem:[%s322 + $0x18] sm:$0xf]
        %v425 = vld [vmem:[%s322 + $0x1c] sm:$0xf]
        %v426 = vld [vmem:[%s322 + $0x20] sm:$0xf]
        %v427 = vld [vmem:[%s322 + $0x24] sm:$0xf]
        %v428 = vld [vmem:[%s322 + $0x28] sm:$0xf]
        %v429 = vld [vmem:[%s322 + $0x2c] sm:$0xf]
        %v430 = vld [vmem:[%s322 + $0x30] sm:$0xf]
        %v431 = vld [vmem:[%s322 + $0x34] sm:$0xf]
        %v432 = vld [vmem:[%s322 + $0x38] sm:$0xf]
        %v433 = vld [vmem:[%s322 + $0x3c] sm:$0xf]
        %v438 = vunpack.c.l.b16 %v414
        %v439 = vunpack.c.l.b16 %v415
        %v440 = vunpack.c.l.b16 %v416
        %v441 = vunpack.c.l.b16 %v417
        %v442 = vpack.c.b16 %v439, %v438
        %v443 = vpack.c.b16 %v441, %v440
        %v462 = vunpack.c.l.b16 %v418
        %v463 = vunpack.c.l.b16 %v419
        %v464 = vunpack.c.l.b16 %v420
        %v465 = vunpack.c.l.b16 %v421
        %v466 = vunpack.c.l.b16 %v422
        %v467 = vunpack.c.l.b16 %v423
        %v468 = vunpack.c.l.b16 %v424
        %v469 = vunpack.c.l.b16 %v425
        %v470 = vunpack.c.l.b16 %v426
        %v471 = vunpack.c.l.b16 %v427
        %v472 = vunpack.c.l.b16 %v428
        %v473 = vunpack.c.l.b16 %v429
        %v474 = vunpack.c.l.b16 %v430
        %v475 = vunpack.c.l.b16 %v431
        %v476 = vunpack.c.l.b16 %v432
        %v477 = vunpack.c.l.b16 %v433
        %v478 = vpack.c.b16 %v463, %v462
        %v479 = vpack.c.b16 %v465, %v464
        %v480 = vpack.c.b16 %v467, %v466
        %v481 = vpack.c.b16 %v469, %v468
        %v482 = vpack.c.b16 %v471, %v470
        %v483 = vpack.c.b16 %v473, %v472
        %v484 = vpack.c.b16 %v475, %v474
        %v485 = vpack.c.b16 %v477, %v476
        %494 = vmatprep.subr.bf16.mxu0 0
        %495 = vmatpush1.bf16.msra.mxu0 %v478
        %496 = vmatprep.subr.bf16.mxu0 0
        %497 = vmatpush1.bf16.msra.mxu0 %v479
        %498 = vmatprep.subr.bf16.mxu0 0
        %499 = vmatpush1.bf16.msra.mxu0 %v480
        %500 = vmatprep.subr.bf16.mxu0 0
        %501 = vmatpush1.bf16.msra.mxu0 %v481
        %502 = vmatprep.subr.bf16.mxu0 0
        %503 = vmatpush1.bf16.msra.mxu0 %v482
        %504 = vmatprep.subr.bf16.mxu0 0
        %505 = vmatpush1.bf16.msra.mxu0 %v483
        %506 = vmatprep.subr.bf16.mxu0 0
        %507 = vmatpush1.bf16.msra.mxu0 %v484
        %508 = vmatprep.subr.bf16.mxu0 0
        %509 = vmatpush1.bf16.msra.mxu0 %v485
        %510 = vmatprep.subr.bf16.mxu0 0
        %511 = vmatpush1.bf16.msra.mxu0 0
        %512 = vmatprep.subr.bf16.mxu0 0
        %513 = vmatpush1.bf16.msra.mxu0 0
        %514 = vmatprep.subr.bf16.mxu0 0
        %515 = vmatpush1.bf16.msra.mxu0 0
        %516 = vmatprep.subr.bf16.mxu0 0
        %517 = vmatpush1.bf16.msra.mxu0 0
        %518 = vmatprep.subr.bf16.mxu0 0
        %519 = vmatpush1.bf16.msra.mxu0 0
        %520 = vmatprep.subr.bf16.mxu0 0
        %521 = vmatpush1.bf16.msra.mxu0 0
        %522 = vmatprep.subr.bf16.mxu0 0
        %523 = vmatpush1.bf16.msra.mxu0 0
        %524 = vmatprep.subr.bf16.mxu0 0
        %525 = vmatpush1.bf16.msra.mxu0 0
        %526 = vmatprep.mubr.bf16.mxu0 0
        %527 = vmatmul.mubr.bf16.gmra.mrb[0].mxu0 %v442
        %v528 = vpop.f32.mrb[0].mxu0
        %v529 = vadd.f32 0.0, %v528
        %v530 = vpop.f32.mrb[0].mxu0
        %v531 = vpop.f32.mrb[0].mxu0
        %v532 = vadd.f32 0.0, %v531
        %v533 = vpop.f32.mrb[0].mxu0
        %534 = vmatprep.mubr.bf16.mxu0 0
        %535 = vmatmul.mubr.bf16.gmra.mrb[0].mxu0 %v443
        %v536 = vpop.f32.mrb[0].mxu0
        %v537 = vadd.f32 0.0, %v536
        %v538 = vpop.f32.mrb[0].mxu0
        %v539 = vpop.f32.mrb[0].mxu0
        %v540 = vadd.f32 0.0, %v539
        %v541 = vpop.f32.mrb[0].mxu0
        %542 = vdwg.mxu0
        %v543 = vadd.f32 %v529, %v532
        %v544 = vadd.f32 %v543, %v537
        %v545 = vadd.f32 %v544, %v540
        %v546 = vrot.slane %v545, 4
        %v547 = vadd.f32 %v545, %v546
        %v548 = vrot.slane %v547, 2
        %v549 = vadd.f32 %v547, %v548
        %v550 = vrot.slane %v549, 1
        %v551 = vadd.f32 %v549, %v550
        %v552 = vmul.f32 %v529, %v529
        %v553 = vmul.f32 %v532, %v532
        %v554 = vmul.f32 %v537, %v537
        %v555 = vmul.f32 %v540, %v540
        %v556 = vadd.f32 %v552, %v553
        %v557 = vadd.f32 %v556, %v554
        %v558 = vadd.f32 %v557, %v555
        %v559 = vrot.slane %v558, 4
        %v560 = vadd.f32 %v558, %v559
        %v561 = vrot.slane %v560, 2
        %v562 = vadd.f32 %v560, %v561
        %v563 = vrot.slane %v562, 1
        %v564 = vadd.f32 %v562, %v563
        %v565 = vmul.f32 %v551, 0.03125
        %v566 = vmul.f32 %v564, 0.03125
        %v567 = vmul.f32 %v565, %v565
        %v568 = vsub.f32 %v566, %v567
        %v569 = vmax.f32 %v568, 0.0
        %v570 = vld [vmem:[%s330] sm:$0x1]
        %v571 = vadd.f32 %v569, 1e-05
        %v572 = vrsqrt.pop %v571
        %v573 = vmul.f32 %v570, %v572
        %v574 = vld [vmem:[%s338] sm:$0x1]
        %v575 = vmul.f32 %v565, %v573
        %v576 = vsub.f32 %v574, %v575
        %v578 = vlaneseq
        %v579 = vshrl.u32 %v578, 7
        %v580 = vsub.s32 0, %v579
        %v581 = vrot.slane %v573, %v580
        %v583 = vmul.f32 %v529, %v581
        %v584 = vmul.f32 %v532, %v581
        %v585 = vmul.f32 %v537, %v581
        %v586 = vmul.f32 %v540, %v581
        %v588 = vlaneseq
        %v589 = vshrl.u32 %v588, 7
        %v590 = vsub.s32 0, %v589
        %v591 = vrot.slane %v576, %v590
        %v593 = vadd.f32 %v583, %v591
        %v594 = vadd.f32 %v584, %v591
        %v595 = vadd.f32 %v585, %v591
        %v596 = vadd.f32 %v586, %v591
        %v597 = vmax.f32 %v593, 0.0
        %v598 = vmax.f32 %v594, 0.0
        %v599 = vmax.f32 %v595, 0.0
        %v600 = vmax.f32 %v596, 0.0
        %v601 = vld [vmem:[#allocation13] sm:$0xff]
        %v602 = vld [vmem:[#allocation13 + $0x8] sm:$0xff]
        %v603 = vld [vmem:[#allocation13 + $0x10] sm:$0xff]
        %v604 = vld [vmem:[#allocation13 + $0x18] sm:$0xff]
        %v605 = vld [vmem:[#allocation13 + $0x20] sm:$0xff]
        %v606 = vld [vmem:[#allocation13 + $0x28] sm:$0xff]
        %v607 = vld [vmem:[#allocation13 + $0x30] sm:$0xff]
        %v608 = vld [vmem:[#allocation13 + $0x38] sm:$0xff]
        %v609 = vpack.c.bf16 %v598, %v597
        %v610 = vpack.c.bf16 %v600, %v599
        %v611 = vld [vmem:[%s347] sm:$0xff]
        %v612 = vld [vmem:[%s347 + $0x8] sm:$0xff]
        %v613 = vld [vmem:[%s347 + $0x10] sm:$0xff]
        %v614 = vld [vmem:[%s347 + $0x18] sm:$0xff]
        %v615 = vld [vmem:[%s347 + $0x20] sm:$0xff]
        %v616 = vld [vmem:[%s347 + $0x28] sm:$0xff]
        %v617 = vld [vmem:[%s347 + $0x30] sm:$0xff]
        %v618 = vld [vmem:[%s347 + $0x38] sm:$0xff]
        %v619 = vld [vmem:[%s347 + $0x40] sm:$0xff]
        %v620 = vld [vmem:[%s347 + $0x48] sm:$0xff]
        %v621 = vld [vmem:[%s347 + $0x50] sm:$0xff]
        %v622 = vld [vmem:[%s347 + $0x58] sm:$0xff]
        %v623 = vld [vmem:[%s347 + $0x60] sm:$0xff]
        %v624 = vld [vmem:[%s347 + $0x68] sm:$0xff]
        %v625 = vld [vmem:[%s347 + $0x70] sm:$0xff]
        %v626 = vld [vmem:[%s347 + $0x78] sm:$0xff]
        %v643 = vunpack.c.l.b16 %v611
        %v644 = vunpack.c.h.b16 %v611
        %v645 = vunpack.c.l.b16 %v612
        %v646 = vunpack.c.h.b16 %v612
        %v647 = vunpack.c.l.b16 %v613
        %v648 = vunpack.c.h.b16 %v613
        %v649 = vunpack.c.l.b16 %v614
        %v650 = vunpack.c.h.b16 %v614
        %v651 = vunpack.c.l.b16 %v615
        %v652 = vunpack.c.h.b16 %v615
        %v653 = vunpack.c.l.b16 %v616
        %v654 = vunpack.c.h.b16 %v616
        %v655 = vunpack.c.l.b16 %v617
        %v656 = vunpack.c.h.b16 %v617
        %v657 = vunpack.c.l.b16 %v618
        %v658 = vunpack.c.h.b16 %v618
        %v659 = vunpack.c.l.b16 %v619
        %v660 = vunpack.c.h.b16 %v619
        %v661 = vunpack.c.l.b16 %v620
        %v662 = vunpack.c.h.b16 %v620
        %v663 = vunpack.c.l.b16 %v621
        %v664 = vunpack.c.h.b16 %v621
        %v665 = vunpack.c.l.b16 %v622
        %v666 = vunpack.c.h.b16 %v622
        %v667 = vunpack.c.l.b16 %v623
        %v668 = vunpack.c.h.b16 %v623
        %v669 = vunpack.c.l.b16 %v624
        %v670 = vunpack.c.h.b16 %v624
        %v671 = vunpack.c.l.b16 %v625
        %v672 = vunpack.c.h.b16 %v625
        %v673 = vunpack.c.l.b16 %v626
        %v674 = vunpack.c.h.b16 %v626
        %v675 = vpack.c.b16 %v645, %v643
        %v676 = vpack.c.b16 %v646, %v644
        %v677 = vpack.c.b16 %v649, %v647
        %v678 = vpack.c.b16 %v650, %v648
        %v679 = vpack.c.b16 %v653, %v651
        %v680 = vpack.c.b16 %v654, %v652
        %v681 = vpack.c.b16 %v657, %v655
        %v682 = vpack.c.b16 %v658, %v656
        %v683 = vpack.c.b16 %v661, %v659
        %v684 = vpack.c.b16 %v662, %v660
        %v685 = vpack.c.b16 %v665, %v663
        %v686 = vpack.c.b16 %v666, %v664
        %v687 = vpack.c.b16 %v669, %v667
        %v688 = vpack.c.b16 %v670, %v668
        %v689 = vpack.c.b16 %v673, %v671
        %v690 = vpack.c.b16 %v674, %v672
        %707 = vmatprep.subr.bf16.mxu0 %v676
        %708 = vmatpush1.bf16.msra.mxu0 %v675
        %709 = vmatprep.subr.bf16.mxu0 %v678
        %710 = vmatpush1.bf16.msra.mxu0 %v677
        %711 = vmatprep.subr.bf16.mxu0 %v680
        %712 = vmatpush1.bf16.msra.mxu0 %v679
        %713 = vmatprep.subr.bf16.mxu0 %v682
        %714 = vmatpush1.bf16.msra.mxu0 %v681
        %715 = vmatprep.subr.bf16.mxu0 %v684
        %716 = vmatpush1.bf16.msra.mxu0 %v683
        %717 = vmatprep.subr.bf16.mxu0 %v686
        %718 = vmatpush1.bf16.msra.mxu0 %v685
        %719 = vmatprep.subr.bf16.mxu0 %v688
        %720 = vmatpush1.bf16.msra.mxu0 %v687
        %721 = vmatprep.subr.bf16.mxu0 %v690
        %722 = vmatpush1.bf16.msra.mxu0 %v689
        %723 = vmatprep.subr.bf16.mxu0 0
        %724 = vmatpush1.bf16.msra.mxu0 0
        %725 = vmatprep.subr.bf16.mxu0 0
        %726 = vmatpush1.bf16.msra.mxu0 0
        %727 = vmatprep.subr.bf16.mxu0 0
        %728 = vmatpush1.bf16.msra.mxu0 0
        %729 = vmatprep.subr.bf16.mxu0 0
        %730 = vmatpush1.bf16.msra.mxu0 0
        %731 = vmatprep.subr.bf16.mxu0 0
        %732 = vmatpush1.bf16.msra.mxu0 0
        %733 = vmatprep.subr.bf16.mxu0 0
        %734 = vmatpush1.bf16.msra.mxu0 0
        %735 = vmatprep.subr.bf16.mxu0 0
        %736 = vmatpush1.bf16.msra.mxu0 0
        %737 = vmatprep.subr.bf16.mxu0 0
        %738 = vmatpush1.bf16.msra.mxu0 0
        %739 = vmatprep.mubr.bf16.mxu0 0
        %740 = vmatmul.mubr.bf16.gmra.mrb[0].mxu0 %v609
        %v741 = vpop.f32.mrb[0].mxu0
        %v742 = vadd.f32 0.0, %v741
        %v743 = vpop.f32.mrb[0].mxu0
        %v744 = vadd.f32 0.0, %v743
        %v745 = vpop.f32.mrb[0].mxu0
        %v746 = vadd.f32 0.0, %v745
        %v747 = vpop.f32.mrb[0].mxu0
        %v748 = vadd.f32 0.0, %v747
        %749 = vmatprep.mubr.bf16.mxu0 0
        %750 = vmatmul.mubr.bf16.gmra.mrb[0].mxu0 %v610
        %v751 = vpop.f32.mrb[0].mxu0
        %v752 = vadd.f32 0.0, %v751
        %v753 = vpop.f32.mrb[0].mxu0
        %v754 = vadd.f32 0.0, %v753
        %v755 = vpop.f32.mrb[0].mxu0
        %v756 = vadd.f32 0.0, %v755
        %v757 = vpop.f32.mrb[0].mxu0
        %v758 = vadd.f32 0.0, %v757
        %759 = vdwg.mxu0
        %v760 = vadd.f32 %v601, %v742
        %v761 = vadd.f32 %v602, %v744
        %v762 = vadd.f32 %v603, %v746
        %v763 = vadd.f32 %v604, %v748
        %v764 = vadd.f32 %v605, %v752
        %v765 = vadd.f32 %v606, %v754
        %v766 = vadd.f32 %v607, %v756
        %v767 = vadd.f32 %v608, %v758
        %768 = vst [vmem:[#allocation13] sm:$0xff] %v760
        %769 = vst [vmem:[#allocation13 + $0x8] sm:$0xff] %v761
        %770 = vst [vmem:[#allocation13 + $0x10] sm:$0xff] %v762
        %771 = vst [vmem:[#allocation13 + $0x18] sm:$0xff] %v763
        %772 = vst [vmem:[#allocation13 + $0x20] sm:$0xff] %v764
        %773 = vst [vmem:[#allocation13 + $0x28] sm:$0xff] %v765
        %774 = vst [vmem:[#allocation13 + $0x30] sm:$0xff] %v766
        %775 = vst [vmem:[#allocation13 + $0x38] sm:$0xff] %v767
        // Predicated region
        $region73: #{tpu_custom_call.1} parent=43 // pred_check
          %p776 = pneg %p185
        $region74: #{tpu_custom_call.1} parent=43 // pred_check_branch
          %778 = sbr.rel (%p776) target = $region76
        $region75: #{tpu_custom_call.1} parent=43 // pred_region
          %s780 = ssub.s32 1024, 1024
          %781 = vsyncadd [#allocation4], %s780
          %s782 = sshll.u32 [#allocation13], 4
          %s783 = int_to_ptr.vmem [resolvable:$true] %s782
          %788 = dma.vmem_to_hbm [thread:$0]  %s783, 1024, %s6, [#allocation4], 256, 256, 16
        $region76: #{tpu_custom_call.1} parent=43 // pred_fallthru
          _
        // Predicated region
        $region77: #{tpu_custom_call.1} parent=43 // pred_check
          %p789 = pneg %p185
        $region78: #{tpu_custom_call.1} parent=43 // pred_check_branch
          %791 = sbr.rel (%p789) target = $region80
        $region79: #{tpu_custom_call.1} parent=43 // pred_region
          %792 = dma.done [#allocation4], 1024
        $region80: #{tpu_custom_call.1} parent=43 // pred_fallthru
          _
      $region44: #{tpu_custom_call.1} parent=5 // pred_fallthru
        _
      %p793 = scmp.le.s32.totalorder 2, %s21
      // Predicated region
      $region81: #{tpu_custom_call.1} parent=5 // pred_check
        %p794 = pneg %p793
      $region82: #{tpu_custom_call.1} parent=5 // pred_check_branch
        %796 = sbr.rel (%p794) target = $region84
      $region83: #{tpu_custom_call.1} parent=5 // pred_region
        %s797 = ssub.s32 %s21, 2
      $region84: #{tpu_custom_call.1} parent=5 // pred_fallthru
        _
    $region6: #{tpu_custom_call.1} parent=1 // loop_footer
      %s25 = sadd.s32 1, %s21
    $region7: #{tpu_custom_call.1} parent=1 // loop_footer_branch
      %20 = sbr.rel target = $region3
    $region8: #{tpu_custom_call.1} parent=1 // loop_exit
      _
    %798 = vsyncpa [#allocation3], 1
    %s799 = scalar_lea.sflag [#allocation3], 1
    %800 = vsyncpa %s799, 1
    %801 = vsyncpa [#allocation6], 1
    %s802 = scalar_lea.sflag [#allocation6], 1
    %803 = vsyncpa %s802, 1
    %804 = vsyncpa [#allocation9], 1
    %s805 = scalar_lea.sflag [#allocation9], 1
    %806 = vsyncpa %s805, 1
    %807 = vsyncpa [#allocation12], 1
    %808 = vsyncpa [#allocation4], 1
    %s809 = scalar_lea.sflag [#allocation4], 1
    %810 = vsyncpa %s809, 1

</llo_original>
